<compile_context>
chip_gen: v7x
topology: tpu7x:2x2x1
jax: 0.10.0
libtpu: 0.0.40
codegen_flags: <defaults>
</compile_context>

<pallas_src>
import functools

import jax
import jax.numpy as jnp
from jax.experimental import pallas as pl
from jax.experimental.pallas import tpu as pltpu


def _round_up(x, m):
    return ((x + m - 1) // m) * m


def _focal_factor(omp, gamma):
    """(1 - pt)**gamma on the gathered [tile_n, 1] column.

    Integer gamma -> explicit multiplies (VALU, no EUP pow).
    Non-integer gamma -> exp(g * log(omp)) with a clamp, still only on [tile_n, 1].
    """
    g = float(gamma)
    if g == int(g) and 0 <= int(g) <= 8:
        gi = int(g)
        if gi == 0:
            return jnp.ones_like(omp)
        acc = omp
        for _ in range(gi - 1):
            acc = acc * omp
        return acc
    safe = jnp.maximum(omp, jnp.finfo(omp.dtype).tiny)
    return jnp.where(omp > 0.0, jnp.exp(g * jnp.log(safe)), jnp.zeros_like(omp))


def _focal_loss_kernel(x_ref, t_ref, w_ref, out_ref, num_acc, den_acc, *, gamma):
    pid = pl.program_id(0)

    @pl.when(pid == 0)
    def _():
        num_acc[...] = jnp.zeros_like(num_acc)
        den_acc[...] = jnp.zeros_like(den_acc)

    x = x_ref[...].astype(jnp.float32)   # [tile_n, C] logits (f32 compute)
    t = t_ref[...]                       # [tile_n, 1] int32 (padded rows: -1)
    w = w_ref[...]                       # [1, C] f32 class weights (resident)

    # log-softmax pieces: single full-width exp (LSE) only.
    m = jnp.max(x, axis=1, keepdims=True)                 # [tile_n, 1]
    z = x - m                                             # [tile_n, C]
    lse = jnp.log(jnp.sum(jnp.exp(z), axis=1, keepdims=True))  # [tile_n, 1]

    # Gather the target column FIRST via a one-hot mask (no lane gather).
    col = jax.lax.broadcasted_iota(jnp.int32, x.shape, 1)      # [tile_n, C]
    onehot = col == t                                          # [tile_n, C]
    z_t = jnp.sum(jnp.where(onehot, z, 0.0), axis=1, keepdims=True)  # [tile_n, 1]
    w_t = jnp.sum(jnp.where(onehot, w, 0.0), axis=1, keepdims=True)  # [tile_n, 1]
    # Padded / out-of-range targets never match -> w_t == 0 -> zero contribution.

    # Focal modulation on the gathered [tile_n, 1] column only.
    logpt_t = z_t - lse                        # log p_t
    pt_t = jnp.exp(logpt_t)
    omp = jnp.maximum(1.0 - pt_t, 0.0)         # clamp rounding (pt_t > 1) -> no NaN
    focal_t = _focal_factor(omp, gamma) * logpt_t

    num_acc[...] += -jnp.sum(w_t * focal_t, keepdims=True)  # weighted NLL numerator
    den_acc[...] += jnp.sum(w_t, keepdims=True)             # weight normalizer

    @pl.when(pid == pl.num_programs(0) - 1)
    def _():
        out_ref[...] = num_acc[...] / den_acc[...]


def focal_loss(x, target, weight, gamma=2.0, tile_n=512):
    """x: [N, C] float (f32 or bf16), target: [N] int, weight: [C] float -> scalar f32."""
    N, C = x.shape
    t = target.astype(jnp.int32)
    w2d = weight.astype(jnp.float32).reshape(1, C)

    # Row tile: multiple of 8 sublanes, bounded by a conservative scoped-VMEM budget.
    itemsize = jnp.dtype(x.dtype).itemsize
    per_row_bytes = C * itemsize + 128 * 4            # x row + lane-padded int32 target row
    budget = 24 << 20                                  # leave headroom below 32 MiB scoped VMEM
    max_rows = max(8, (budget // (2 * per_row_bytes)) // 8 * 8)
    tile_n = int(min(_round_up(int(tile_n), 8), max_rows, _round_up(N, 8)))

    n_pad = _round_up(N, tile_n)
    if n_pad != N:
        x = jnp.pad(x, ((0, n_pad - N), (0, 0)))
        t = jnp.pad(t, (0, n_pad - N), constant_values=-1)   # never matches a class
    t2d = t.reshape(n_pad, 1)

    grid = (n_pad // tile_n,)

    # Explicit scoped-VMEM limit: double-buffered x + target tiles, resident weight, slack.
    vmem_needed = 2 * tile_n * per_row_bytes + 2 * 8 * max(C, 128) * 4 + (2 << 20)
    vmem_limit = int(min(max(vmem_needed, 8 << 20), 32 << 20))

    kernel = functools.partial(_focal_loss_kernel, gamma=float(gamma))

    out = pl.pallas_call(
        kernel,
        out_shape=jax.ShapeDtypeStruct((1, 1), jnp.float32),
        grid_spec=pltpu.PrefetchScalarGridSpec(
            num_scalar_prefetch=0,
            grid=grid,
            in_specs=[
                pl.BlockSpec((tile_n, C), lambda i: (i, 0)),
                pl.BlockSpec((tile_n, 1), lambda i: (i, 0)),
                pl.BlockSpec((1, C), lambda i: (0, 0)),      # resident class weights
            ],
            out_specs=pl.BlockSpec((1, 1), lambda i: (0, 0)),
            scratch_shapes=[
                pltpu.VMEM((1, 1), jnp.float32),             # running numerator
                pltpu.VMEM((1, 1), jnp.float32),             # running denominator
            ],
        ),
        compiler_params=pltpu.CompilerParams(
            dimension_semantics=("arbitrary",),              # reduction axis (accumulator)
            vmem_limit_bytes=vmem_limit,
        ),
    )(x, t2d, w2d)
    return out[0, 0]


def _focal_loss_ref(x, target, weight, gamma=2.0):
    # Pure-JAX reference mirroring the PyTorch module.
    logpt = jax.nn.log_softmax(x.astype(jnp.float32), axis=1)
    pt = jnp.exp(logpt)
    logpt = (1.0 - pt) ** gamma * logpt
    sel = jnp.take_along_axis(logpt, target[:, None], axis=1)[:, 0]
    wt = weight[target]
    return jnp.sum(-wt * sel) / jnp.sum(wt)


if __name__ == "__main__":
    N, C = 8, 32
    gamma = 2.0

    key = jax.random.PRNGKey(0)
    kx, kt = jax.random.split(key)
    x = jax.random.normal(kx, (N, C), dtype=jnp.float32)
    target = jax.random.randint(kt, (N,), 0, C, dtype=jnp.int32)
    # Deterministic class weights (the module's buffer), synthetic init.
    weight = 0.5 + jnp.arange(C, dtype=jnp.float32) / C

    loss = focal_loss(x, target, weight, gamma=gamma)
    loss = jax.block_until_ready(loss)

    ref = _focal_loss_ref(x, target, weight, gamma=gamma)
    assert jnp.allclose(loss, ref, rtol=1e-5, atol=1e-5), (loss, ref)

    print("KERNEL_OK")
</pallas_src>

<mosaic_0001>
module attributes {stable_mosaic.version = 11 : i64} {
  func.func @_focal_loss_kernel(%arg0: i32, %arg1: memref<8x32xf32, #tpu.memory_space<vmem>>, %arg2: memref<8x1xi32, #tpu.memory_space<vmem>>, %arg3: memref<1x32xf32, #tpu.memory_space<vmem>>, %arg4: memref<1x1xf32, #tpu.memory_space<vmem>>, %arg5: memref<1x1xf32, #tpu.memory_space<vmem>>, %arg6: memref<1x1xf32, #tpu.memory_space<vmem>>) attributes {dimension_semantics = [#tpu.dimension_semantics<arbitrary>], iteration_bounds = array<i64: 1>, scalar_prefetch = 0 : i64, scratch_operands = 2 : i64, tpu.core_type = #tpu.core_type<tc>, window_params = [{transform_indices = @transform_0, window_bounds = array<i64: 8, 32>}, {transform_indices = @transform_1, window_bounds = array<i64: 8, 1>}, {pipeline_mode = #tpu.pipeline_mode<synchronous>, transform_indices = @transform_2, window_bounds = array<i64: 1, 32>}, {pipeline_mode = #tpu.pipeline_mode<synchronous>, transform_indices = @transform_3, window_bounds = array<i64: 1, 1>}]} {
    %c0_i32 = arith.constant 0 : i32
    %0 = arith.cmpi eq, %arg0, %c0_i32 : i32
    %1 = arith.extui %0 : i1 to i32
    %c0_i32_0 = arith.constant 0 : i32
    %2 = arith.cmpi ne, %1, %c0_i32_0 : i32
    scf.if %2 {
      %cst_26 = arith.constant 0.000000e+00 : f32
      %57 = vector.broadcast %cst_26 : f32 to vector<1x1xf32>
      %c0_27 = arith.constant 0 : index
      %c0_28 = arith.constant 0 : index
      %58 = vector.load %arg5[%c0_27, %c0_28] : memref<1x1xf32, #tpu.memory_space<vmem>>, vector<1x1xf32>
      tpu.vector_store %arg5[%c0_27, %c0_28], %57 {strides = array<i32>} : memref<1x1xf32, #tpu.memory_space<vmem>>, vector<1x1xf32>,
      %cst_29 = arith.constant 0.000000e+00 : f32
      %59 = vector.broadcast %cst_29 : f32 to vector<1x1xf32>
      %c0_30 = arith.constant 0 : index
      %c0_31 = arith.constant 0 : index
      %60 = vector.load %arg6[%c0_30, %c0_31] : memref<1x1xf32, #tpu.memory_space<vmem>>, vector<1x1xf32>
      tpu.vector_store %arg6[%c0_30, %c0_31], %59 {strides = array<i32>} : memref<1x1xf32, #tpu.memory_space<vmem>>, vector<1x1xf32>,
    } else {
    }
    %c0 = arith.constant 0 : index
    %c0_1 = arith.constant 0 : index
    %3 = vector.load %arg1[%c0, %c0_1] : memref<8x32xf32, #tpu.memory_space<vmem>>, vector<8x32xf32>
    %c0_2 = arith.constant 0 : index
    %c0_3 = arith.constant 0 : index
    %4 = vector.load %arg2[%c0_2, %c0_3] : memref<8x1xi32, #tpu.memory_space<vmem>>, vector<8x1xi32>
    %c0_4 = arith.constant 0 : index
    %c0_5 = arith.constant 0 : index
    %5 = vector.load %arg3[%c0_4, %c0_5] : memref<1x32xf32, #tpu.memory_space<vmem>>, vector<1x32xf32>
    %cst = arith.constant dense<0xFF800000> : vector<8xf32>
    %6 = vector.multi_reduction <maximumf>, %3, %cst [1] : vector<8x32xf32> to vector<8xf32>
    %7 = vector.shape_cast %6 : vector<8xf32> to vector<8x1xf32>
    %8 = vector.broadcast %7 : vector<8x1xf32> to vector<8x32xf32>
    %9 = arith.subf %3, %8 : vector<8x32xf32>
    %10 = math.exp %9 : vector<8x32xf32>
    %cst_6 = arith.constant dense<0.000000e+00> : vector<8xf32>
    %11 = vector.multi_reduction <add>, %10, %cst_6 [1] : vector<8x32xf32> to vector<8xf32>
    %12 = vector.shape_cast %11 : vector<8xf32> to vector<8x1xf32>
    %13 = math.log %12 : vector<8x1xf32>
    %14 = tpu.iota {dimensions = array<i32: 1>} : vector<8x32xi32>
    %15 = vector.broadcast %4 : vector<8x1xi32> to vector<8x32xi32>
    %16 = arith.cmpi eq, %14, %15 : vector<8x32xi32>
    %cst_7 = arith.constant 0.000000e+00 : f32
    %17 = vector.broadcast %cst_7 : f32 to vector<8x32xf32>
    %18 = arith.select %16, %9, %17 : vector<8x32xi1>, vector<8x32xf32>
    %cst_8 = arith.constant dense<0.000000e+00> : vector<8xf32>
    %19 = vector.multi_reduction <add>, %18, %cst_8 [1] : vector<8x32xf32> to vector<8xf32>
    %20 = vector.shape_cast %19 : vector<8xf32> to vector<8x1xf32>
    %cst_9 = arith.constant 0.000000e+00 : f32
    %21 = vector.shape_cast %5 : vector<1x32xf32> to vector<1x32xf32>
    %22 = vector.broadcast %21 : vector<1x32xf32> to vector<8x32xf32>
    %23 = vector.broadcast %cst_9 : f32 to vector<8x32xf32>
    %24 = arith.select %16, %22, %23 : vector<8x32xi1>, vector<8x32xf32>
    %cst_10 = arith.constant dense<0.000000e+00> : vector<8xf32>
    %25 = vector.multi_reduction <add>, %24, %cst_10 [1] : vector<8x32xf32> to vector<8xf32>
    %26 = vector.shape_cast %25 : vector<8xf32> to vector<8x1xf32>
    %27 = arith.subf %20, %13 : vector<8x1xf32>
    %28 = math.exp %27 : vector<8x1xf32>
    %cst_11 = arith.constant 1.000000e+00 : f32
    %29 = vector.broadcast %cst_11 : f32 to vector<8x1xf32>
    %30 = arith.subf %29, %28 : vector<8x1xf32>
    %cst_12 = arith.constant 0.000000e+00 : f32
    %31 = vector.broadcast %cst_12 : f32 to vector<8x1xf32>
    %32 = arith.maximumf %30, %31 : vector<8x1xf32>
    %33 = arith.mulf %32, %32 : vector<8x1xf32>
    %34 = arith.mulf %33, %27 : vector<8x1xf32>
    %c0_13 = arith.constant 0 : index
    %c0_14 = arith.constant 0 : index
    %35 = vector.load %arg5[%c0_13, %c0_14] : memref<1x1xf32, #tpu.memory_space<vmem>>, vector<1x1xf32>
    %36 = arith.mulf %26, %34 : vector<8x1xf32>
    %37 = vector.shape_cast %36 : vector<8x1xf32> to vector<1x8x1xf32>
    %cst_15 = arith.constant dense<0.000000e+00> : vector<1xf32>
    %38 = vector.multi_reduction <add>, %37, %cst_15 [1, 2] : vector<1x8x1xf32> to vector<1xf32>
    %39 = vector.shape_cast %38 : vector<1xf32> to vector<1x1x1xf32>
    %40 = vector.extract %39[0, 0, 0] : f32 from vector<1x1x1xf32>
    %41 = vector.broadcast %40 : f32 to vector<1x1xf32>
    %cst_16 = arith.constant 0.000000e+00 : f32
    %42 = vector.broadcast %cst_16 : f32 to vector<1x1xf32>
    %43 = arith.subf %42, %41 : vector<1x1xf32>
    %44 = arith.addf %35, %43 : vector<1x1xf32>
    %c0_17 = arith.constant 0 : index
    %c0_18 = arith.constant 0 : index
    %45 = vector.load %arg5[%c0_17, %c0_18] : memref<1x1xf32, #tpu.memory_space<vmem>>, vector<1x1xf32>
    tpu.vector_store %arg5[%c0_17, %c0_18], %44 {strides = array<i32>} : memref<1x1xf32, #tpu.memory_space<vmem>>, vector<1x1xf32>,
    %c0_19 = arith.constant 0 : index
    %c0_20 = arith.constant 0 : index
    %46 = vector.load %arg6[%c0_19, %c0_20] : memref<1x1xf32, #tpu.memory_space<vmem>>, vector<1x1xf32>
    %47 = vector.shape_cast %26 : vector<8x1xf32> to vector<1x8x1xf32>
    %cst_21 = arith.constant dense<0.000000e+00> : vector<1xf32>
    %48 = vector.multi_reduction <add>, %47, %cst_21 [1, 2] : vector<1x8x1xf32> to vector<1xf32>
    %49 = vector.shape_cast %48 : vector<1xf32> to vector<1x1x1xf32>
    %50 = vector.extract %49[0, 0, 0] : f32 from vector<1x1x1xf32>
    %51 = vector.broadcast %50 : f32 to vector<1x1xf32>
    %52 = arith.addf %46, %51 : vector<1x1xf32>
    %c0_22 = arith.constant 0 : index
    %c0_23 = arith.constant 0 : index
    %53 = vector.load %arg6[%c0_22, %c0_23] : memref<1x1xf32, #tpu.memory_space<vmem>>, vector<1x1xf32>
    tpu.vector_store %arg6[%c0_22, %c0_23], %52 {strides = array<i32>} : memref<1x1xf32, #tpu.memory_space<vmem>>, vector<1x1xf32>,
    %c0_i32_24 = arith.constant 0 : i32
    %54 = arith.cmpi eq, %arg0, %c0_i32_24 : i32
    %55 = arith.extui %54 : i1 to i32
    %c0_i32_25 = arith.constant 0 : i32
    %56 = arith.cmpi ne, %55, %c0_i32_25 : i32
    scf.if %56 {
      %c0_26 = arith.constant 0 : index
      %c0_27 = arith.constant 0 : index
      %57 = vector.load %arg5[%c0_26, %c0_27] : memref<1x1xf32, #tpu.memory_space<vmem>>, vector<1x1xf32>
      %c0_28 = arith.constant 0 : index
      %c0_29 = arith.constant 0 : index
      %58 = vector.load %arg6[%c0_28, %c0_29] : memref<1x1xf32, #tpu.memory_space<vmem>>, vector<1x1xf32>
      %59 = arith.divf %57, %58 : vector<1x1xf32>
      %c0_30 = arith.constant 0 : index
      %c0_31 = arith.constant 0 : index
      %60 = vector.load %arg4[%c0_30, %c0_31] : memref<1x1xf32, #tpu.memory_space<vmem>>, vector<1x1xf32>
      tpu.vector_store %arg4[%c0_30, %c0_31], %59 {strides = array<i32>} : memref<1x1xf32, #tpu.memory_space<vmem>>, vector<1x1xf32>,
    } else {
    }
    return
  }
  func.func @transform_0(%arg0: i32) -> (i32, i32) {
    %c0_i32 = arith.constant 0 : i32
    %c0_i32_0 = arith.constant 0 : i32
    return %arg0, %c0_i32 : i32, i32
  }
  func.func @transform_1(%arg0: i32) -> (i32, i32) {
    %c0_i32 = arith.constant 0 : i32
    %c0_i32_0 = arith.constant 0 : i32
    return %arg0, %c0_i32 : i32, i32
  }
  func.func @transform_2(%arg0: i32) -> (i32, i32) {
    %c0_i32 = arith.constant 0 : i32
    %c0_i32_0 = arith.constant 0 : i32
    %c0_i32_1 = arith.constant 0 : i32
    return %c0_i32, %c0_i32_0 : i32, i32
  }
  func.func @transform_3(%arg0: i32) -> (i32, i32) {
    %c0_i32 = arith.constant 0 : i32
    %c0_i32_0 = arith.constant 0 : i32
    %c0_i32_1 = arith.constant 0 : i32
    return %c0_i32, %c0_i32_0 : i32, i32
  }
}

</mosaic_0001>

<llo_original>
// kernel: tpu_custom_call.1
$region0: #{tpu_custom_call.1}
  #allocation0 [shape = 'u32[]', space=smem, size = 0x4, offset = 0x4, fixed_abs, tag = 'smem constant byte address 0x4 - core index']
  #allocation1 [shape = 'u32[144,128]{1,0:T(1,128)}', space=vmem, size = 0x12000, scoped, tag = 'internal scratch']
  #allocation2 [shape = 'f32[1,1]{1,0:T(1,128)}', space=vmem, size = 0x200, scoped, tag = 'scratch operand']
  #allocation3 [shape = 'f32[1,1]{1,0:T(1,128)}', space=vmem, size = 0x200, scoped, tag = 'scratch operand']
  %s0 = inlined_call_operand.vmem [shape: f32[8,32], index: 0, kind: input, shape index: {}]
  %s1 = inlined_call_operand.vmem [shape: s32[8,1], index: 1, kind: input, shape index: {}]
  %s2 = inlined_call_operand.vmem [shape: f32[1,32], index: 2, kind: input, shape index: {}]
  %s3 = inlined_call_operand.hbm [shape: f32[1,1], index: 3, kind: output, shape index: {}]
  %s4 = sld [smem:[#allocation0]]
  $region30: #{tpu_custom_call.1} parent=0
    _
  %s6 = ssub.s32 1, %s4
  %s7 = scalar_select 0, %s6, %s4
  $region1: #{tpu_custom_call.1} parent=0
    #allocation4 [shape = 'u8[512]{0}', space=vmem, size = 0x400, scoped, tag = 'output window, operand 0, single buffered']
    #allocation5 [shape = 's32[1]{0}', space=sflag, size = 0x4, scoped, tag = 'scoped memory for tpu_custom_call.1']
    %8 = vsyncpa [#allocation5], 0
    // Predicated region
    $region2: #{tpu_custom_call.1} parent=1 // pred_check
      _
    $region3: #{tpu_custom_call.1} parent=1 // pred_check_branch
      %10 = sbr.rel (0) target = $region5
    $region4: #{tpu_custom_call.1} parent=1 // pred_region
      _
    $region5: #{tpu_custom_call.1} parent=1 // pred_fallthru
      _
    // Predicated region
    $region6: #{tpu_custom_call.1} parent=1 // pred_check
      _
    $region7: #{tpu_custom_call.1} parent=1 // pred_check_branch
      %12 = sbr.rel (0) target = $region9
    $region8: #{tpu_custom_call.1} parent=1 // pred_region
      _
    $region9: #{tpu_custom_call.1} parent=1 // pred_fallthru
      _
    // Predicated region
    $region10: #{tpu_custom_call.1} parent=1 // pred_check
      _
    $region11: #{tpu_custom_call.1} parent=1 // pred_check_branch
      %14 = sbr.rel (0) target = $region13
    $region12: #{tpu_custom_call.1} parent=1 // pred_region
      _
    $region13: #{tpu_custom_call.1} parent=1 // pred_fallthru
      _
    %p15 = scmp.eq.s32.totalorder 0, 0
    // Predicated region
    $region14: #{tpu_custom_call.1} parent=1 // pred_check
      %p16 = pneg %p15
    $region15: #{tpu_custom_call.1} parent=1 // pred_check_branch
      %18 = sbr.rel (%p16) target = $region17
    $region16: #{tpu_custom_call.1} parent=1 // pred_region
      %vm19 = vcmask 0
      %20 = vst.msk [vmem:[#allocation2] sm:$0x1] %vm19, 0.0
      %21 = vst.msk [vmem:[#allocation3] sm:$0x1] %vm19, 0.0
    $region17: #{tpu_custom_call.1} parent=1 // pred_fallthru
      _
    %v22 = vld [vmem:[%s0] sm:$0xff]
    %v23 = vld [vmem:[%s1] sm:$0xff]
    %v24 = vld [vmem:[%s2] sm:$0x1]
    %vm25 = vcmask 261120
    %v26 = vsel %vm25, %v22, -inf
    %27 = vmax.xlane.f32.xlu0 %v26
    %v28 = vpop.xlane.xlu0 %27
    %v29 = vsub.f32 %v22, %v28
    %v30 = vmul.f32 %v29, 1.442695
    %v31 = vpow.pop %v30
    %v32 = vsel %vm25, %v31, 0.0
    %33 = vadd.xlane.f32.xlu0 %v32
    %v34 = vpop.xlane.xlu0 %33
    %v35 = vlog2.pop %v34
    %v36 = vmul.f32 %v35, 0.6931472
    %v37 = vlaneseq
    %v38 = vand.u32 %v37, 127
    %39 = vset.pattern.permute.xlu0 0
    %40 = vperm.xlu0 %39, %v23
    %v41 = vpop.permute.xlu0 %40
    %vm42 = vcmp.eq.s32.totalorder %v38, %v41
    %v43 = vsel %vm42, %v29, 0.0
    %v44 = vsel %vm25, %v43, 0.0
    %45 = vadd.xlane.f32.xlu0 %v44
    %v46 = vpop.xlane.xlu0 %45
    %v48 = vlaneseq
    %v49 = vshrl.u32 %v48, 7
    %v50 = vsub.s32 0, %v49
    %v51 = vrot.slane %v24, %v50
    %v53 = vsel %vm42, %v51, 0.0
    %v54 = vsel %vm25, %v53, 0.0
    %55 = vadd.xlane.f32.xlu0 %v54
    %v56 = vpop.xlane.xlu0 %55
    %v57 = vsub.f32 %v46, %v36
    %v58 = vmul.f32 %v57, 1.442695
    %v59 = vpow.pop %v58
    %v60 = vsub.f32 1.0, %v59
    %v61 = vmax.f32 %v60, 0.0
    %v62 = vmul.f32 %v61, %v61
    %v63 = vmul.f32 %v62, %v57
    %v64 = vld [vmem:[#allocation2] sm:$0x1]
    %v65 = vmul.f32 %v56, %v63
    %vm66 = vcmask 7168
    %v67 = vsel %vm66, %v65, 0.0
    %68 = vadd.xlane.f32.xlu0 %v67
    %v69 = vpop.xlane.xlu0 %68
    %v70 = vrot.slane %v69, 4
    %v71 = vadd.f32 %v69, %v70
    %v72 = vrot.slane %v71, 2
    %v73 = vadd.f32 %v71, %v72
    %v74 = vrot.slane %v73, 1
    %v75 = vadd.f32 %v73, %v74
    %s76 = vtos %v75
    %v77 = vstv %s76
    %v78 = vsub.f32 0.0, %v77
    %v79 = vadd.f32 %v64, %v78
    %vm80 = vcmask 0
    %81 = vst.msk [vmem:[#allocation2] sm:$0x1] %vm80, %v79
    %v82 = vld [vmem:[#allocation3] sm:$0x1]
    %v83 = vsel %vm66, %v56, 0.0
    %84 = vadd.xlane.f32.xlu0 %v83
    %v85 = vpop.xlane.xlu0 %84
    %v86 = vrot.slane %v85, 4
    %v87 = vadd.f32 %v85, %v86
    %v88 = vrot.slane %v87, 2
    %v89 = vadd.f32 %v87, %v88
    %v90 = vrot.slane %v89, 1
    %v91 = vadd.f32 %v89, %v90
    %s92 = vtos %v91
    %v93 = vstv %s92
    %v94 = vadd.f32 %v82, %v93
    %95 = vst.msk [vmem:[#allocation3] sm:$0x1] %vm80, %v94
    // Predicated region
    $region18: #{tpu_custom_call.1} parent=1 // pred_check
      %p96 = pneg %p15
    $region19: #{tpu_custom_call.1} parent=1 // pred_check_branch
      %98 = sbr.rel (%p96) target = $region21
    $region20: #{tpu_custom_call.1} parent=1 // pred_region
      %v99 = vld [vmem:[#allocation2] sm:$0x1]
      %v100 = vld [vmem:[#allocation3] sm:$0x1]
      %v101 = vrcp.pop %v100
      %v102 = vmul.f32 %v99, %v101
      %103 = vst.msk [vmem:[#allocation4] sm:$0x1] %vm80, %v102
    $region21: #{tpu_custom_call.1} parent=1 // pred_fallthru
      _
    // Predicated region
    $region22: #{tpu_custom_call.1} parent=1 // pred_check
      _
    $region23: #{tpu_custom_call.1} parent=1 // pred_check_branch
      %105 = sbr.rel (0) target = $region25
    $region24: #{tpu_custom_call.1} parent=1 // pred_region
      %s107 = ssub.s32 16, 16
      %108 = vsyncadd [#allocation5], %s107
      %s110 = sshll.u32 [#allocation4], 4
      %s111 = int_to_ptr.vmem [resolvable:$true] %s110
      %113 = dma.vmem_to_hbm [thread:$0]  %s111, 16, %s3, [#allocation5]
    $region25: #{tpu_custom_call.1} parent=1 // pred_fallthru
      _
    // Predicated region
    $region26: #{tpu_custom_call.1} parent=1 // pred_check
      _
    $region27: #{tpu_custom_call.1} parent=1 // pred_check_branch
      %115 = sbr.rel (0) target = $region29
    $region28: #{tpu_custom_call.1} parent=1 // pred_region
      %116 = dma.done [#allocation5], 16
    $region29: #{tpu_custom_call.1} parent=1 // pred_fallthru
      _
    %117 = vsyncpa [#allocation5], 1

</llo_original>
